<compile_context>
chip_gen: v6e
topology: v6e:2x2x1
jax: 0.10.0
libtpu: 0.0.40
codegen_flags: <defaults>
</compile_context>

<pallas_src>
import functools

import jax
import jax.numpy as jnp
from jax.experimental import pallas as pl
from jax.experimental.pallas import tpu as pltpu


def _position_linear_kernel(x_ref, w_ref, b_ref, o_ref, acc_ref):
    # Grid = (M tiles, N tiles, K tiles); K (axis 2) is the reduction axis.
    @pl.when(pl.program_id(2) == 0)
    def _init():
        acc_ref[...] = jnp.zeros_like(acc_ref)

    acc_ref[...] += jnp.dot(
        x_ref[...], w_ref[...], preferred_element_type=jnp.float32
    )

    @pl.when(pl.program_id(2) == pl.num_programs(2) - 1)
    def _finalize():
        # Bias is already f32 (cast hoisted to the wrapper).
        o_ref[...] = (acc_ref[...] + b_ref[...]).astype(o_ref.dtype)


def _round_up(x, m):
    return (x + m - 1) // m * m


def _pick_tile(full, candidates):
    for t in candidates:
        if full > t and full % t == 0:
            return t
    return full


@functools.partial(jax.jit, static_argnames=("tm",))
def position_linear(x, w, b, *, tm=256):
    """y = x @ w + b over the last axis, matching torch.addmm semantics."""
    in_dim = x.shape[-1]
    out_dim = w.shape[-1]
    lead = x.shape[:-1]

    x2d = x.reshape(-1, in_dim)  # (M, K)
    m = x2d.shape[0]

    # ---------------- tile selection --------------------------------------
    tm = max(8, _round_up(tm, 8))
    m_pad = _round_up(m, 8)
    if m_pad <= tm:
        tm_eff = m_pad            # single M tile; block dim == full padded M
    else:
        tm_eff = tm
        m_pad = _round_up(m, tm_eff)

    # N tile: lane-dense multiple of 128 when out_dim allows, else full.
    tn = _pick_tile(out_dim, (512, 256, 128)) if out_dim % 128 == 0 else out_dim
    # K tile: keep K whole unless it is large and 128-aligned.
    if in_dim % 128 == 0 and in_dim > 2048:
        tk = _pick_tile(in_dim, (1024, 512, 256))
    else:
        tk = in_dim

    if m_pad != m:
        x2d = jnp.pad(x2d, ((0, m_pad - m), (0, 0)))

    # Hoist the bias cast out of the kernel body; make it 2-D for broadcast.
    b2d = b.astype(jnp.float32).reshape(1, out_dim)

    grid = (m_pad // tm_eff, out_dim // tn, in_dim // tk)

    # ---------------- VMEM budget ------------------------------------------
    bx = x.dtype.itemsize
    bw = w.dtype.itemsize
    bo = x.dtype.itemsize
    vmem_needed = (
        2 * tm_eff * tk * bx      # double-buffered x tile
        + 2 * tk * tn * bw        # double-buffered w tile
        + 2 * tm_eff * tn * bo    # double-buffered out tile
        + tm_eff * tn * 4         # f32 accumulator scratch
        + 2 * tn * 4              # bias tile
    )
    # Stay comfortably inside v7x's 64 MiB VMEM while leaving compiler headroom.
    vmem_limit = int(min(max(2 * vmem_needed, 32 << 20), 56 << 20))

    cost = pl.CostEstimate(
        flops=2 * m_pad * in_dim * out_dim,
        bytes_accessed=(
            m_pad * in_dim * bx
            + grid[0] * in_dim * out_dim * bw   # weight re-streamed per M tile
            + m_pad * out_dim * bo
        ),
        transcendentals=0,
    )

    out = pl.pallas_call(
        _position_linear_kernel,
        out_shape=jax.ShapeDtypeStruct((m_pad, out_dim), x.dtype),
        grid_spec=pltpu.PrefetchScalarGridSpec(
            num_scalar_prefetch=0,
            grid=grid,
            in_specs=[
                pl.BlockSpec((tm_eff, tk), lambda i, j, k: (i, k)),  # x tile
                pl.BlockSpec((tk, tn), lambda i, j, k: (k, j)),      # w tile
                pl.BlockSpec((1, tn), lambda i, j, k: (0, j)),       # bias
            ],
            out_specs=pl.BlockSpec((tm_eff, tn), lambda i, j, k: (i, j)),
            scratch_shapes=[pltpu.VMEM((tm_eff, tn), jnp.float32)],
        ),
        compiler_params=pltpu.CompilerParams(
            dimension_semantics=("parallel", "parallel", "arbitrary"),
            vmem_limit_bytes=vmem_limit,
        ),
        cost_estimate=cost,
    )(x2d, w, b2d)

    if m_pad != m:
        out = out[:m]
    return out.reshape(*lead, out_dim)


if __name__ == "__main__":
    # Small shapes consistent with the module's forward: (batch, seq, in_dim).
    batch, seq, in_dim, out_dim = 2, 8, 32, 32

    key = jax.random.PRNGKey(0)
    kx, kw = jax.random.split(key)

    x = jax.random.normal(kx, (batch, seq, in_dim), dtype=jnp.float32)
    # Parameter init matching torch.nn.init.normal_(std=0.015) and zero bias.
    w = 0.015 * jax.random.normal(kw, (in_dim, out_dim), dtype=jnp.float32)
    b = jnp.zeros((out_dim,), dtype=jnp.float32)

    y = position_linear(x, w, b)
    jax.block_until_ready(y)

    # Pure-JAX reference check.
    y_ref = (x.reshape(-1, in_dim) @ w + b).reshape(batch, seq, out_dim)
    assert y.shape == (batch, seq, out_dim)
    assert jnp.allclose(y, y_ref, atol=1e-5, rtol=1e-5)

    # Sanity-check a larger, ragged-M / tiled-N,K shape path as well.
    x_big = jax.random.normal(kx, (3, 137, 256), dtype=jnp.float32)
    w_big = 0.015 * jax.random.normal(kw, (256, 384), dtype=jnp.float32)
    b_big = jnp.zeros((384,), dtype=jnp.float32)
    y_big = position_linear(x_big, w_big, b_big)
    jax.block_until_ready(y_big)
    y_big_ref = (x_big.reshape(-1, 256) @ w_big + b_big).reshape(3, 137, 384)
    assert jnp.allclose(y_big, y_big_ref, atol=1e-4, rtol=1e-4)

    print("KERNEL_OK")
</pallas_src>

<mosaic_0001>
module attributes {stable_mosaic.version = 11 : i64} {
  func.func @_position_linear_kernel(%arg0: i32, %arg1: i32, %arg2: i32, %arg3: memref<16x32xf32, #tpu.memory_space<vmem>>, %arg4: memref<32x32xf32, #tpu.memory_space<vmem>>, %arg5: memref<1x32xf32, #tpu.memory_space<vmem>>, %arg6: memref<16x32xf32, #tpu.memory_space<vmem>>, %arg7: memref<16x32xf32, #tpu.memory_space<vmem>>) attributes {dimension_semantics = [#tpu.dimension_semantics<parallel>, #tpu.dimension_semantics<parallel>, #tpu.dimension_semantics<arbitrary>], iteration_bounds = array<i64: 1, 1, 1>, scalar_prefetch = 0 : i64, scratch_operands = 1 : i64, tpu.core_type = #tpu.core_type<tc>, window_params = [{transform_indices = @transform_0, window_bounds = array<i64: 16, 32>}, {transform_indices = @transform_1, window_bounds = array<i64: 32, 32>}, {transform_indices = @transform_2, window_bounds = array<i64: 1, 32>}, {transform_indices = @transform_3, window_bounds = array<i64: 16, 32>}]} {
    %c0_i32 = arith.constant 0 : i32
    %0 = arith.cmpi eq, %arg2, %c0_i32 : i32
    %1 = arith.extui %0 : i1 to i32
    %c0_i32_0 = arith.constant 0 : i32
    %2 = arith.cmpi ne, %1, %c0_i32_0 : i32
    scf.if %2 {
      %cst_10 = arith.constant 0.000000e+00 : f32
      %12 = vector.broadcast %cst_10 : f32 to vector<16x32xf32>
      %c0_11 = arith.constant 0 : index
      %c0_12 = arith.constant 0 : index
      %13 = vector.load %arg7[%c0_11, %c0_12] : memref<16x32xf32, #tpu.memory_space<vmem>>, vector<16x32xf32>
      tpu.vector_store %arg7[%c0_11, %c0_12], %12 {strides = array<i32>} : memref<16x32xf32, #tpu.memory_space<vmem>>, vector<16x32xf32>,
    } else {
    }
    %c0 = arith.constant 0 : index
    %c0_1 = arith.constant 0 : index
    %3 = vector.load %arg7[%c0, %c0_1] : memref<16x32xf32, #tpu.memory_space<vmem>>, vector<16x32xf32>
    %c0_2 = arith.constant 0 : index
    %c0_3 = arith.constant 0 : index
    %4 = vector.load %arg3[%c0_2, %c0_3] : memref<16x32xf32, #tpu.memory_space<vmem>>, vector<16x32xf32>
    %c0_4 = arith.constant 0 : index
    %c0_5 = arith.constant 0 : index
    %5 = vector.load %arg4[%c0_4, %c0_5] : memref<32x32xf32, #tpu.memory_space<vmem>>, vector<32x32xf32>
    %cst = arith.constant dense<0.000000e+00> : vector<16x32xf32>
    %6 = tpu.matmul %4, %5, %cst {dimension_numbers = #tpu.dot_dimension_numbers<[1], [0], [0], [1], [0, 0, 1, 1], [], []>} : vector<16x32xf32>, vector<32x32xf32>, vector<16x32xf32> -> vector<16x32xf32>
    %7 = arith.addf %3, %6 : vector<16x32xf32>
    %c0_6 = arith.constant 0 : index
    %c0_7 = arith.constant 0 : index
    %8 = vector.load %arg7[%c0_6, %c0_7] : memref<16x32xf32, #tpu.memory_space<vmem>>, vector<16x32xf32>
    tpu.vector_store %arg7[%c0_6, %c0_7], %7 {strides = array<i32>} : memref<16x32xf32, #tpu.memory_space<vmem>>, vector<16x32xf32>,
    %c0_i32_8 = arith.constant 0 : i32
    %9 = arith.cmpi eq, %arg2, %c0_i32_8 : i32
    %10 = arith.extui %9 : i1 to i32
    %c0_i32_9 = arith.constant 0 : i32
    %11 = arith.cmpi ne, %10, %c0_i32_9 : i32
    scf.if %11 {
      %c0_10 = arith.constant 0 : index
      %c0_11 = arith.constant 0 : index
      %12 = vector.load %arg7[%c0_10, %c0_11] : memref<16x32xf32, #tpu.memory_space<vmem>>, vector<16x32xf32>
      %c0_12 = arith.constant 0 : index
      %c0_13 = arith.constant 0 : index
      %13 = vector.load %arg5[%c0_12, %c0_13] : memref<1x32xf32, #tpu.memory_space<vmem>>, vector<1x32xf32>
      %14 = vector.broadcast %13 : vector<1x32xf32> to vector<16x32xf32>
      %15 = arith.addf %12, %14 : vector<16x32xf32>
      %c0_14 = arith.constant 0 : index
      %c0_15 = arith.constant 0 : index
      %16 = vector.load %arg6[%c0_14, %c0_15] : memref<16x32xf32, #tpu.memory_space<vmem>>, vector<16x32xf32>
      tpu.vector_store %arg6[%c0_14, %c0_15], %15 {strides = array<i32>} : memref<16x32xf32, #tpu.memory_space<vmem>>, vector<16x32xf32>,
    } else {
    }
    return
  }
  func.func @transform_0(%arg0: i32, %arg1: i32, %arg2: i32) -> (i32, i32) {
    %c0_i32 = arith.constant 0 : i32
    return %arg0, %arg2 : i32, i32
  }
  func.func @transform_1(%arg0: i32, %arg1: i32, %arg2: i32) -> (i32, i32) {
    %c0_i32 = arith.constant 0 : i32
    return %arg2, %arg1 : i32, i32
  }
  func.func @transform_2(%arg0: i32, %arg1: i32, %arg2: i32) -> (i32, i32) {
    %c0_i32 = arith.constant 0 : i32
    %c0_i32_0 = arith.constant 0 : i32
    return %c0_i32, %arg1 : i32, i32
  }
  func.func @transform_3(%arg0: i32, %arg1: i32, %arg2: i32) -> (i32, i32) {
    %c0_i32 = arith.constant 0 : i32
    return %arg0, %arg1 : i32, i32
  }
}

</mosaic_0001>

<llo_original>
// kernel: position_linear.1
$region0: #{position_linear.1}
  #allocation0 [shape = 'u32[]', space=smem, size = 0x4, offset = 0x4, fixed_abs, tag = 'smem constant byte address 0x4 - core index']
  #allocation1 [shape = 'u32[144,128]{1,0:T(1,128)}', space=vmem, size = 0x12000, scoped, tag = 'internal scratch']
  #allocation2 [shape = 'f32[16,32]{1,0:T(8,128)}', space=vmem, size = 0x2000, scoped, tag = 'scratch operand']
  %s0 = inlined_call_operand.hbm [shape: f32[16,32], index: 0, kind: input, shape index: {}]
  %s1 = inlined_call_operand.hbm [shape: f32[32,32], index: 1, kind: input, shape index: {}]
  %s2 = inlined_call_operand.vmem [shape: f32[1,32], index: 2, kind: input, shape index: {}]
  %s3 = inlined_call_operand.hbm [shape: f32[16,32], index: 3, kind: output, shape index: {}]
  %s4 = sld [smem:[#allocation0]]
  $region38: #{position_linear.1} parent=0
    _
  %s6 = ssub.s32 1, %s4
  %s7 = scalar_select 0, %s6, %s4
  $region1: #{position_linear.1} parent=0
    #allocation3 [shape = 'u8[8192]{0}', space=vmem, size = 0x2000, scoped, tag = 'input window, operand 0, single buffered']
    #allocation4 [shape = 's32[1]{0}', space=sflag, size = 0x4, scoped, tag = 'scoped memory for position_linear.1']
    #allocation5 [shape = 's32[1]{0}', space=sflag, size = 0x4, scoped, tag = 'scoped memory for position_linear.1']
    #allocation6 [shape = 'u8[16384]{0}', space=vmem, size = 0x4000, scoped, tag = 'input window, operand 1, single buffered']
    #allocation7 [shape = 's32[1]{0}', space=sflag, size = 0x4, scoped, tag = 'scoped memory for position_linear.1']
    #allocation8 [shape = 'u8[8192]{0}', space=vmem, size = 0x2000, scoped, tag = 'output window, operand 0, single buffered']
    %8 = vsyncpa [#allocation4], 0
    %9 = vsyncpa [#allocation7], 0
    %10 = vsyncpa [#allocation5], 0
    // Predicated region
    $region2: #{position_linear.1} parent=1 // pred_check
      _
    $region3: #{position_linear.1} parent=1 // pred_check_branch
      %12 = sbr.rel (0) target = $region5
    $region4: #{position_linear.1} parent=1 // pred_region
      %s14 = ssub.s32 256, 256
      %15 = vsyncadd [#allocation4], %s14
      %s16 = sshll.u32 [#allocation3], 4
      %s17 = int_to_ptr.vmem [resolvable:$true] %s16
      %22 = dma.hbm_to_vmem [thread:$0]  %s0, 256, %s17, [#allocation4], 128, 128, 8
    $region5: #{position_linear.1} parent=1 // pred_fallthru
      _
    // Predicated region
    $region6: #{position_linear.1} parent=1 // pred_check
      _
    $region7: #{position_linear.1} parent=1 // pred_check_branch
      %24 = sbr.rel (0) target = $region9
    $region8: #{position_linear.1} parent=1 // pred_region
      %s26 = ssub.s32 512, 512
      %27 = vsyncadd [#allocation7], %s26
      %s28 = sshll.u32 [#allocation6], 4
      %s29 = int_to_ptr.vmem [resolvable:$true] %s28
      %34 = dma.hbm_to_vmem [thread:$0]  %s1, 512, %s29, [#allocation7], 128, 128, 8
    $region9: #{position_linear.1} parent=1 // pred_fallthru
      _
    // Predicated region
    $region10: #{position_linear.1} parent=1 // pred_check
      _
    $region11: #{position_linear.1} parent=1 // pred_check_branch
      %36 = sbr.rel (0) target = $region13
    $region12: #{position_linear.1} parent=1 // pred_region
      _
    $region13: #{position_linear.1} parent=1 // pred_fallthru
      _
    // Predicated region
    $region14: #{position_linear.1} parent=1 // pred_check
      _
    $region15: #{position_linear.1} parent=1 // pred_check_branch
      %38 = sbr.rel (0) target = $region17
    $region16: #{position_linear.1} parent=1 // pred_region
      %39 = dma.done [#allocation4], 256
    $region17: #{position_linear.1} parent=1 // pred_fallthru
      _
    // Predicated region
    $region18: #{position_linear.1} parent=1 // pred_check
      _
    $region19: #{position_linear.1} parent=1 // pred_check_branch
      %41 = sbr.rel (0) target = $region21
    $region20: #{position_linear.1} parent=1 // pred_region
      %42 = dma.done [#allocation7], 512
    $region21: #{position_linear.1} parent=1 // pred_fallthru
      _
    %p43 = scmp.eq.s32.totalorder 0, 0
    // Predicated region
    $region22: #{position_linear.1} parent=1 // pred_check
      %p44 = pneg %p43
    $region23: #{position_linear.1} parent=1 // pred_check_branch
      %46 = sbr.rel (%p44) target = $region25
    $region24: #{position_linear.1} parent=1 // pred_region
      %vm47 = vcmask 261120
      %48 = vst.msk [vmem:[#allocation2] sm:$0xff] %vm47, 0.0
      %49 = vst.msk [vmem:[#allocation2 + $0x8] sm:$0xff] %vm47, 0.0
    $region25: #{position_linear.1} parent=1 // pred_fallthru
      _
    %v50 = vld [vmem:[#allocation2] sm:$0xff]
    %v51 = vld [vmem:[#allocation2 + $0x8] sm:$0xff]
    %v52 = vld [vmem:[#allocation3] sm:$0xff]
    %v53 = vld [vmem:[#allocation3 + $0x8] sm:$0xff]
    %v54 = vld [vmem:[#allocation6] sm:$0xff]
    %v55 = vld [vmem:[#allocation6 + $0x8] sm:$0xff]
    %v56 = vld [vmem:[#allocation6 + $0x10] sm:$0xff]
    %v57 = vld [vmem:[#allocation6 + $0x18] sm:$0xff]
    %vm58 = vcmask 261120
    %v60 = vsel %vm58, %v52, 0
    %v63 = vsel %vm58, %v53, 0
    %65 = vmatprep.subr.mxu0 0.0
    %66 = vmatpush1.msra.mxu0 0.0
    %67 = vmatprep.subr.mxu0 0.0
    %68 = vmatpush1.msra.mxu0 0.0
    %69 = vmatprep.subr.mxu0 0.0
    %70 = vmatpush1.msra.mxu0 0.0
    %71 = vmatprep.subr.mxu0 0.0
    %72 = vmatpush1.msra.mxu0 0.0
    %73 = vmatprep.subr.mxu0 0.0
    %74 = vmatpush1.msra.mxu0 0.0
    %75 = vmatprep.subr.mxu0 0.0
    %76 = vmatpush1.msra.mxu0 0.0
    %77 = vmatprep.subr.mxu0 0.0
    %78 = vmatpush1.msra.mxu0 0.0
    %79 = vmatprep.subr.mxu0 0.0
    %80 = vmatpush1.msra.mxu0 0.0
    %81 = vmatprep.subr.mxu0 0.0
    %82 = vmatpush1.msra.mxu0 0.0
    %83 = vmatprep.subr.mxu0 0.0
    %84 = vmatpush1.msra.mxu0 0.0
    %85 = vmatprep.subr.mxu0 0.0
    %86 = vmatpush1.msra.mxu0 0.0
    %87 = vmatprep.subr.mxu0 0.0
    %88 = vmatpush1.msra.mxu0 0.0
    %89 = vmatprep.subr.mxu0 0.0
    %90 = vmatpush1.msra.mxu0 %v57
    %91 = vmatprep.subr.mxu0 0.0
    %92 = vmatpush1.msra.mxu0 %v56
    %93 = vmatprep.subr.mxu0 0.0
    %94 = vmatpush1.msra.mxu0 %v55
    %95 = vmatprep.subr.mxu0 0.0
    %96 = vmatpush1.msra.mxu0 %v54
    %97 = vmatprep.subr.mxu0 0.0
    %98 = vmatpush2.msra.mxu0 0.0
    %99 = vmatprep.subr.mxu0 0.0
    %100 = vmatpush2.msra.mxu0 0.0
    %101 = vmatprep.subr.mxu0 0.0
    %102 = vmatpush2.msra.mxu0 0.0
    %103 = vmatprep.subr.mxu0 0.0
    %104 = vmatpush2.msra.mxu0 0.0
    %105 = vmatprep.subr.mxu0 0.0
    %106 = vmatpush2.msra.mxu0 0.0
    %107 = vmatprep.subr.mxu0 0.0
    %108 = vmatpush2.msra.mxu0 0.0
    %109 = vmatprep.subr.mxu0 0.0
    %110 = vmatpush2.msra.mxu0 0.0
    %111 = vmatprep.subr.mxu0 0.0
    %112 = vmatpush2.msra.mxu0 0.0
    %113 = vmatprep.subr.mxu0 0.0
    %114 = vmatpush2.msra.mxu0 0.0
    %115 = vmatprep.subr.mxu0 0.0
    %116 = vmatpush2.msra.mxu0 0.0
    %117 = vmatprep.subr.mxu0 0.0
    %118 = vmatpush2.msra.mxu0 0.0
    %119 = vmatprep.subr.mxu0 0.0
    %120 = vmatpush2.msra.mxu0 0.0
    %121 = vmatprep.subr.mxu0 0.0
    %122 = vmatpush2.msra.mxu0 0.0
    %123 = vmatprep.subr.mxu0 0.0
    %124 = vmatpush2.msra.mxu0 0.0
    %125 = vmatprep.subr.mxu0 0.0
    %126 = vmatpush2.msra.mxu0 0.0
    %127 = vmatprep.subr.mxu0 0.0
    %128 = vmatpush2.msra.mxu0 0.0
    %129 = vmatprep.mubr.f32.mxu0 0.0
    %130 = vmatmul.mubr.f32.gmra.mxu0 %v60
    %v131 = vpop.f32.mrf.mxu0
    %v132 = vadd.f32 0.0, %v131
    %v133 = vpop.f32.mrf.mxu0
    %134 = vmatprep.mubr.f32.mxu0 0.0
    %135 = vmatmul.mubr.f32.gmra.mxu0 %v63
    %v136 = vpop.f32.mrf.mxu0
    %v137 = vadd.f32 0.0, %v136
    %v138 = vpop.f32.mrf.mxu0
    %139 = vdwg.mxu0
    %v140 = vadd.f32 %v50, %v132
    %v141 = vadd.f32 %v51, %v137
    %142 = vst.msk [vmem:[#allocation2] sm:$0xff] %vm58, %v140
    %143 = vst.msk [vmem:[#allocation2 + $0x8] sm:$0xff] %vm58, %v141
    // Predicated region
    $region26: #{position_linear.1} parent=1 // pred_check
      %p144 = pneg %p43
    $region27: #{position_linear.1} parent=1 // pred_check_branch
      %146 = sbr.rel (%p144) target = $region29
    $region28: #{position_linear.1} parent=1 // pred_region
      %v147 = vld [vmem:[#allocation2] sm:$0xff]
      %v148 = vld [vmem:[#allocation2 + $0x8] sm:$0xff]
      %v149 = vld [vmem:[%s2] sm:$0x1]
      %v151 = vlaneseq
      %v152 = vshrl.u32 %v151, 7
      %v153 = vsub.s32 0, %v152
      %v154 = vrot.slane %v149, %v153
      %v156 = vadd.f32 %v147, %v154
      %v157 = vadd.f32 %v148, %v154
      %158 = vst.msk [vmem:[#allocation8] sm:$0xff] %vm58, %v156
      %159 = vst.msk [vmem:[#allocation8 + $0x8] sm:$0xff] %vm58, %v157
    $region29: #{position_linear.1} parent=1 // pred_fallthru
      _
    // Predicated region
    $region30: #{position_linear.1} parent=1 // pred_check
      _
    $region31: #{position_linear.1} parent=1 // pred_check_branch
      %161 = sbr.rel (0) target = $region33
    $region32: #{position_linear.1} parent=1 // pred_region
      %s163 = ssub.s32 256, 256
      %164 = vsyncadd [#allocation5], %s163
      %s165 = sshll.u32 [#allocation8], 4
      %s166 = int_to_ptr.vmem [resolvable:$true] %s165
      %171 = dma.vmem_to_hbm [thread:$0]  %s166, 256, %s3, [#allocation5], 128, 128, 8
    $region33: #{position_linear.1} parent=1 // pred_fallthru
      _
    // Predicated region
    $region34: #{position_linear.1} parent=1 // pred_check
      _
    $region35: #{position_linear.1} parent=1 // pred_check_branch
      %173 = sbr.rel (0) target = $region37
    $region36: #{position_linear.1} parent=1 // pred_region
      %174 = dma.done [#allocation5], 256
    $region37: #{position_linear.1} parent=1 // pred_fallthru
      _
    %175 = vsyncpa [#allocation4], 1
    %176 = vsyncpa [#allocation7], 1
    %177 = vsyncpa [#allocation5], 1

</llo_original>
